<compile_context>
chip_gen: v7x
topology: tpu7x:2x2x1
jax: 0.10.0
libtpu: 0.0.40
codegen_flags: <defaults>
</compile_context>

<pallas_src>
import jax
import jax.numpy as jnp
from jax.experimental import pallas as pl
from jax.experimental.pallas import tpu as pltpu

EPS = 1e-5
LANES = 128  # lane width: matmul outputs / stored slab are padded to this
_TAPS = tuple((dh, dw) for dh in range(3) for dw in range(3))  # tap t = 3*dh+dw


# ---------------------------------------------------------------------------
# In-kernel helpers
# ---------------------------------------------------------------------------
def _bn_scale_shift(y, gamma, beta, m_rows):
    """Training-mode BN, one pass: per-column mean / biased var over rows."""
    inv_m = 1.0 / float(m_rows)
    mean = jnp.sum(y, axis=0, keepdims=True) * inv_m
    ex2 = jnp.sum(y * y, axis=0, keepdims=True) * inv_m
    var = jnp.maximum(ex2 - mean * mean, 0.0)          # clamp: one-pass form
    scale = gamma * jax.lax.rsqrt(var + EPS)
    shift = beta - mean * scale
    return y * scale + shift


def _make_block_kernel(n, ho, wo, planes):
    """Fused BasicBlock kernel closed over static geometry."""
    m_rows = n * ho * wo

    def kernel(p1_ref, w1_ref, g1_ref, b1_ref, w2_ref, g2_ref, b2_ref,
               mask_ref, o_ref):
        # --- conv1 + folded 1x1 shortcut + 9 replicated conv1 copies ---------
        #   cols [0,P)          : shortcut branch (centre-tap patch columns)
        #   cols [(t+1)P,(t+2)P): conv1 branch, replica for tap t  (t=0..8)
        y1 = jnp.dot(p1_ref[...], w1_ref[...], preferred_element_type=jnp.float32)
        y1bn = _bn_scale_shift(y1, g1_ref[...], b1_ref[...], m_rows)
        h1 = jnp.maximum(y1bn, 0.0)                    # relu (shortcut cols unused below)

        # --- build the K-packed conv2 LHS in VMEM (XLU rolls + VPU selects) --
        # group t's lanes get the row-rolled replica for tap t; one precomputed
        # (M,128) 0/1 mask then applies the conv zero-padding boundaries and
        # zeroes the shortcut / unused lanes.
        col = jax.lax.broadcasted_iota(jnp.int32, (1, LANES), 1)
        packed = h1                                    # centre tap (shift 0) is the base
        for t, (dh, dw) in enumerate(_TAPS):
            s = (dh - 1) * wo + (dw - 1)               # source-row offset for tap t
            if s == 0:
                continue
            rolled = pltpu.roll(h1, shift=(-s) % m_rows, axis=0)   # rolled[r] = h1[r+s]
            lo = (t + 1) * planes
            gsel = (col >= lo) & (col < lo + planes)   # (1,128), broadcast over rows
            packed = jnp.where(gsel, rolled, packed)
        packed = packed * mask_ref[...]

        # --- conv2 (3x3 / stride 1 / pad 1): ONE K-packed MXU pass -----------
        # (the K contraction sums the 9 taps; w2c rows outside [P,10P) are 0)
        y2 = jnp.dot(packed, w2_ref[...], preferred_element_type=jnp.float32)
        y2bn = _bn_scale_shift(y2, g2_ref[...], b2_ref[...], m_rows)

        # --- residual add + relu; cols [0,P) carry the block output ----------
        sc = jnp.where(col < planes, y1bn, 0.0)        # bn_s(shortcut), not relu'd
        o_ref[...] = jnp.maximum(y2bn + sc, 0.0).astype(o_ref.dtype)

    return kernel


# ---------------------------------------------------------------------------
# Wrapper-side glue (plain JAX): im2col for conv1, boundary mask, packing
# ---------------------------------------------------------------------------
def im2col_3x3(x_nhwc, stride, k_pad):
    """3x3 patches with padding=1, K padded to k_pad inside the same concat."""
    n, h, w, c = x_nhwc.shape
    xp = jnp.pad(x_nhwc, ((0, 0), (1, 1), (1, 1), (0, 0)))
    ho = (h + 2 - 3) // stride + 1
    wo = (w + 2 - 3) // stride + 1
    cols = [xp[:, dh:dh + stride * ho:stride, dw:dw + stride * wo:stride, :]
            for dh, dw in _TAPS]
    if k_pad > 9 * c:
        cols.append(jnp.zeros((n, ho, wo, k_pad - 9 * c), x_nhwc.dtype))
    patches = jnp.concatenate(cols, axis=-1)           # (N, Ho, Wo, k_pad)
    return patches.reshape(n * ho * wo, k_pad), (n, ho, wo)


def _make_lhs_mask(n, ho, wo, planes):
    """(M,128) 0/1 f32: group-t lanes carry tap-t's zero-padding validity."""
    m = n * ho * wo
    rows = jnp.arange(m, dtype=jnp.int32)
    wo_i = rows % wo
    ho_i = (rows // wo) % ho
    mask = jnp.zeros((m, LANES), jnp.float32)
    for t, (dh, dw) in enumerate(_TAPS):
        hs = ho_i + (dh - 1)
        ws = wo_i + (dw - 1)
        valid = ((hs >= 0) & (hs < ho) & (ws >= 0) & (ws < wo)).astype(jnp.float32)
        lo = (t + 1) * planes
        mask = mask.at[:, lo:lo + planes].set(
            jnp.broadcast_to(valid[:, None], (m, planes)))
    return mask


class BasicBlockPallas:
    expansion = 2

    def __init__(self, in_planes, planes, stride, key):
        assert 10 * planes <= LANES, "tap-packed layout needs (1+9)*planes lanes"
        self.in_planes, self.planes, self.stride = in_planes, planes, stride
        keys = jax.random.split(key, 9)
        s = 0.1
        # raw parameters (flattened (kh,kw,Cin,Cout) layout; also used by ref)
        self.w1 = s * jax.random.normal(keys[0], (9 * in_planes, planes), jnp.float32)
        self.w2 = s * jax.random.normal(keys[1], (9 * planes, planes), jnp.float32)
        self.ws = s * jax.random.normal(keys[2], (in_planes, planes), jnp.float32)
        self.g1 = 1.0 + 0.1 * jax.random.normal(keys[3], (1, planes), jnp.float32)
        self.b1 = 0.1 * jax.random.normal(keys[4], (1, planes), jnp.float32)
        self.g2 = 1.0 + 0.1 * jax.random.normal(keys[5], (1, planes), jnp.float32)
        self.b2 = 0.1 * jax.random.normal(keys[6], (1, planes), jnp.float32)
        self.gs = 1.0 + 0.1 * jax.random.normal(keys[7], (1, planes), jnp.float32)
        self.bs = 0.1 * jax.random.normal(keys[8], (1, planes), jnp.float32)
        self._pack_kernel_params()

    def _pack_kernel_params(self):
        """Pack weights / BN params into the lane-dense kernel layouts."""
        P, C = self.planes, self.in_planes
        self.k1 = -(-9 * C // 8) * 8                   # pad conv1 K to sublane multiple
        # conv1 (+ folded shortcut) -> one (k1,128) weight:
        #   cols [0,P)           : 1x1 shortcut, fed by the centre-tap patch cols
        #   cols [(t+1)P,(t+2)P) : 3x3 conv1 (replica for tap t)
        w1c = jnp.zeros((self.k1, LANES), jnp.float32)
        w1c = w1c.at[:9 * C, P:10 * P].set(jnp.tile(self.w1, (1, 9)))
        w1c = w1c.at[4 * C:5 * C, :P].set(self.ws)     # centre tap = tap index 4
        self.w1c = w1c
        self.g1c = (jnp.ones((1, LANES), jnp.float32)
                    .at[:, :P].set(self.gs)
                    .at[:, P:10 * P].set(jnp.tile(self.g1, (1, 9))))
        self.b1c = (jnp.zeros((1, LANES), jnp.float32)
                    .at[:, :P].set(self.bs)
                    .at[:, P:10 * P].set(jnp.tile(self.b1, (1, 9))))
        # conv2: ONE K-packed (128,128) weight; rows [(t+1)P,(t+2)P) = w2[t],
        # producing block-output channels in cols [0,P).
        self.w2c = (jnp.zeros((LANES, LANES), jnp.float32)
                    .at[P:10 * P, :P].set(self.w2))
        self.g2c = jnp.ones((1, LANES), jnp.float32).at[:, :P].set(self.g2)
        self.b2c = jnp.zeros((1, LANES), jnp.float32).at[:, :P].set(self.b2)

    def __call__(self, x_nchw):
        n, c, h, w = x_nchw.shape
        assert c == self.in_planes
        x = jnp.transpose(x_nchw, (0, 2, 3, 1))                       # NHWC

        p1, (_, ho, wo) = im2col_3x3(x, self.stride, self.k1)         # (M, k1)
        m = n * ho * wo
        mask = _make_lhs_mask(n, ho, wo, self.planes)                 # (M, 128)

        kernel = _make_block_kernel(n, ho, wo, self.planes)
        inputs = (p1, self.w1c, self.g1c, self.b1c,
                  self.w2c, self.g2c, self.b2c, mask)
        in_specs = [pl.BlockSpec(a.shape, lambda i, nd=a.ndim: (0,) * nd)
                    for a in inputs]

        flops = 2 * m * self.k1 * LANES + 2 * m * LANES * LANES       # two MXU passes
        bytes_accessed = int(sum(int(a.size) * a.dtype.itemsize for a in inputs)
                             + m * LANES * 4)
        cost = pl.CostEstimate(flops=flops, transcendentals=2 * LANES,
                               bytes_accessed=bytes_accessed)

        out_full = pl.pallas_call(
            kernel,
            out_shape=jax.ShapeDtypeStruct((m, LANES), jnp.float32),
            grid=(1,),
            in_specs=in_specs,
            out_specs=pl.BlockSpec((m, LANES), lambda i: (0, 0)),
            compiler_params=pltpu.CompilerParams(
                dimension_semantics=("arbitrary",),
                vmem_limit_bytes=32 * 1024 * 1024),
            cost_estimate=cost,
        )(*inputs)

        out = out_full[:, :self.planes].reshape(n, ho, wo, self.planes)
        return jnp.transpose(out, (0, 3, 1, 2))                       # NCHW


# ---------------------------------------------------------------------------
# Pure-JAX reference (for correctness check)
# ---------------------------------------------------------------------------
def _ref_forward(block, x_nchw):
    def conv(x, w_flat, kh, kw, cin, cout, stride, pad):
        w = w_flat.reshape(kh, kw, cin, cout)                         # HWIO
        return jax.lax.conv_general_dilated(
            x, w, (stride, stride), [(pad, pad), (pad, pad)],
            dimension_numbers=("NCHW", "HWIO", "NCHW"))

    def bn(y, gamma, beta):
        mean = jnp.mean(y, axis=(0, 2, 3), keepdims=True)
        var = jnp.mean((y - mean) ** 2, axis=(0, 2, 3), keepdims=True)
        g = gamma.reshape(1, -1, 1, 1)
        b = beta.reshape(1, -1, 1, 1)
        return (y - mean) * jax.lax.rsqrt(var + EPS) * g + b

    ci, p, s = block.in_planes, block.planes, block.stride
    h = jax.nn.relu(bn(conv(x_nchw, block.w1, 3, 3, ci, p, s, 1), block.g1, block.b1))
    y = bn(conv(h, block.w2, 3, 3, p, p, 1, 1), block.g2, block.b2)
    sc = bn(conv(x_nchw, block.ws, 1, 1, ci, p, s, 0), block.gs, block.bs)
    return jax.nn.relu(y + sc)


# ---------------------------------------------------------------------------
if __name__ == "__main__":
    key = jax.random.PRNGKey(0)
    kx, kp = jax.random.split(key)

    in_planes, planes, stride = 4, 8, 2
    x = jax.random.normal(kx, (2, in_planes, 16, 16), jnp.float32)    # NCHW

    block = BasicBlockPallas(in_planes, planes, stride, kp)
    out = jax.block_until_ready(block(x))

    ref = jax.block_until_ready(_ref_forward(block, x))
    assert out.shape == (2, planes, 8, 8), out.shape
    max_err = float(jnp.max(jnp.abs(out - ref)))
    assert max_err < 2e-3, f"mismatch vs reference: {max_err}"

    print("KERNEL_OK")
</pallas_src>

<mosaic_0001>
module attributes {stable_mosaic.version = 11 : i64} {
  func.func @kernel(%arg0: i32, %arg1: memref<128x40xf32, #tpu.memory_space<vmem>>, %arg2: memref<40x128xf32, #tpu.memory_space<vmem>>, %arg3: memref<1x128xf32, #tpu.memory_space<vmem>>, %arg4: memref<1x128xf32, #tpu.memory_space<vmem>>, %arg5: memref<128x128xf32, #tpu.memory_space<vmem>>, %arg6: memref<1x128xf32, #tpu.memory_space<vmem>>, %arg7: memref<1x128xf32, #tpu.memory_space<vmem>>, %arg8: memref<128x128xf32, #tpu.memory_space<vmem>>, %arg9: memref<128x128xf32, #tpu.memory_space<vmem>>) attributes {dimension_semantics = [#tpu.dimension_semantics<arbitrary>], iteration_bounds = array<i64: 1>, scalar_prefetch = 0 : i64, scratch_operands = 0 : i64, tpu.core_type = #tpu.core_type<tc>, window_params = [{pipeline_mode = #tpu.pipeline_mode<synchronous>, transform_indices = @transform_0, window_bounds = array<i64: 128, 40>}, {pipeline_mode = #tpu.pipeline_mode<synchronous>, transform_indices = @transform_1, window_bounds = array<i64: 40, 128>}, {pipeline_mode = #tpu.pipeline_mode<synchronous>, transform_indices = @transform_2, window_bounds = array<i64: 1, 128>}, {pipeline_mode = #tpu.pipeline_mode<synchronous>, transform_indices = @transform_3, window_bounds = array<i64: 1, 128>}, {pipeline_mode = #tpu.pipeline_mode<synchronous>, transform_indices = @transform_4, window_bounds = array<i64: 128, 128>}, {pipeline_mode = #tpu.pipeline_mode<synchronous>, transform_indices = @transform_5, window_bounds = array<i64: 1, 128>}, {pipeline_mode = #tpu.pipeline_mode<synchronous>, transform_indices = @transform_6, window_bounds = array<i64: 1, 128>}, {pipeline_mode = #tpu.pipeline_mode<synchronous>, transform_indices = @transform_7, window_bounds = array<i64: 128, 128>}, {pipeline_mode = #tpu.pipeline_mode<synchronous>, transform_indices = @transform_8, window_bounds = array<i64: 128, 128>}]} {
    %c0 = arith.constant 0 : index
    %c0_0 = arith.constant 0 : index
    %0 = vector.load %arg1[%c0, %c0_0] : memref<128x40xf32, #tpu.memory_space<vmem>>, vector<128x40xf32>
    %c0_1 = arith.constant 0 : index
    %c0_2 = arith.constant 0 : index
    %1 = vector.load %arg2[%c0_1, %c0_2] : memref<40x128xf32, #tpu.memory_space<vmem>>, vector<40x128xf32>
    %cst = arith.constant dense<0.000000e+00> : vector<128x128xf32>
    %2 = tpu.matmul %0, %1, %cst {dimension_numbers = #tpu.dot_dimension_numbers<[1], [0], [0], [1], [0, 0, 1, 1], [], []>} : vector<128x40xf32>, vector<40x128xf32>, vector<128x128xf32> -> vector<128x128xf32>
    %c0_3 = arith.constant 0 : index
    %c0_4 = arith.constant 0 : index
    %3 = vector.load %arg3[%c0_3, %c0_4] : memref<1x128xf32, #tpu.memory_space<vmem>>, vector<1x128xf32>
    %c0_5 = arith.constant 0 : index
    %c0_6 = arith.constant 0 : index
    %4 = vector.load %arg4[%c0_5, %c0_6] : memref<1x128xf32, #tpu.memory_space<vmem>>, vector<1x128xf32>
    %cst_7 = arith.constant dense<0.000000e+00> : vector<128xf32>
    %5 = vector.multi_reduction <add>, %2, %cst_7 [0] : vector<128x128xf32> to vector<128xf32>
    %6 = vector.shape_cast %5 : vector<128xf32> to vector<1x128xf32>
    %cst_8 = arith.constant 7.812500e-03 : f32
    %7 = vector.broadcast %cst_8 : f32 to vector<1x128xf32>
    %8 = arith.mulf %6, %7 : vector<1x128xf32>
    %9 = arith.mulf %2, %2 : vector<128x128xf32>
    %cst_9 = arith.constant dense<0.000000e+00> : vector<128xf32>
    %10 = vector.multi_reduction <add>, %9, %cst_9 [0] : vector<128x128xf32> to vector<128xf32>
    %11 = vector.shape_cast %10 : vector<128xf32> to vector<1x128xf32>
    %cst_10 = arith.constant 7.812500e-03 : f32
    %12 = vector.broadcast %cst_10 : f32 to vector<1x128xf32>
    %13 = arith.mulf %11, %12 : vector<1x128xf32>
    %14 = arith.mulf %8, %8 : vector<1x128xf32>
    %15 = arith.subf %13, %14 : vector<1x128xf32>
    %cst_11 = arith.constant 0.000000e+00 : f32
    %16 = vector.broadcast %cst_11 : f32 to vector<1x128xf32>
    %17 = arith.maximumf %15, %16 : vector<1x128xf32>
    %cst_12 = arith.constant 9.99999974E-6 : f32
    %18 = vector.broadcast %cst_12 : f32 to vector<1x128xf32>
    %19 = arith.addf %17, %18 : vector<1x128xf32>
    %20 = math.rsqrt %19 : vector<1x128xf32>
    %21 = arith.mulf %3, %20 : vector<1x128xf32>
    %22 = arith.mulf %8, %21 : vector<1x128xf32>
    %23 = arith.subf %4, %22 : vector<1x128xf32>
    %24 = vector.broadcast %21 : vector<1x128xf32> to vector<128x128xf32>
    %25 = arith.mulf %2, %24 : vector<128x128xf32>
    %26 = vector.broadcast %23 : vector<1x128xf32> to vector<128x128xf32>
    %27 = arith.addf %25, %26 : vector<128x128xf32>
    %cst_13 = arith.constant 0.000000e+00 : f32
    %28 = vector.broadcast %cst_13 : f32 to vector<128x128xf32>
    %29 = arith.maximumf %27, %28 : vector<128x128xf32>
    %30 = tpu.iota {dimensions = array<i32: 1>} : vector<1x128xi32>
    %c9_i32 = arith.constant 9 : i32
    %31 = tpu.dynamic_rotate %29 by %c9_i32 dim 0 : vector<128x128xf32>, i32 -> vector<128x128xf32>
    %c8_i32 = arith.constant 8 : i32
    %32 = vector.broadcast %c8_i32 : i32 to vector<1x128xi32>
    %33 = arith.cmpi sge, %30, %32 : vector<1x128xi32>
    %c16_i32 = arith.constant 16 : i32
    %34 = vector.broadcast %c16_i32 : i32 to vector<1x128xi32>
    %35 = arith.cmpi slt, %30, %34 : vector<1x128xi32>
    %36 = arith.andi %33, %35 : vector<1x128xi1>
    %37 = vector.shape_cast %36 : vector<1x128xi1> to vector<1x128xi1>
    %38 = vector.broadcast %37 : vector<1x128xi1> to vector<128x128xi1>
    %39 = arith.select %38, %31, %29 : vector<128x128xi1>, vector<128x128xf32>
    %c8_i32_14 = arith.constant 8 : i32
    %40 = tpu.dynamic_rotate %29 by %c8_i32_14 dim 0 : vector<128x128xf32>, i32 -> vector<128x128xf32>
    %c16_i32_15 = arith.constant 16 : i32
    %41 = vector.broadcast %c16_i32_15 : i32 to vector<1x128xi32>
    %42 = arith.cmpi sge, %30, %41 : vector<1x128xi32>
    %c24_i32 = arith.constant 24 : i32
    %43 = vector.broadcast %c24_i32 : i32 to vector<1x128xi32>
    %44 = arith.cmpi slt, %30, %43 : vector<1x128xi32>
    %45 = arith.andi %42, %44 : vector<1x128xi1>
    %46 = vector.shape_cast %45 : vector<1x128xi1> to vector<1x128xi1>
    %47 = vector.broadcast %46 : vector<1x128xi1> to vector<128x128xi1>
    %48 = arith.select %47, %40, %39 : vector<128x128xi1>, vector<128x128xf32>
    %c7_i32 = arith.constant 7 : i32
    %49 = tpu.dynamic_rotate %29 by %c7_i32 dim 0 : vector<128x128xf32>, i32 -> vector<128x128xf32>
    %c24_i32_16 = arith.constant 24 : i32
    %50 = vector.broadcast %c24_i32_16 : i32 to vector<1x128xi32>
    %51 = arith.cmpi sge, %30, %50 : vector<1x128xi32>
    %c32_i32 = arith.constant 32 : i32
    %52 = vector.broadcast %c32_i32 : i32 to vector<1x128xi32>
    %53 = arith.cmpi slt, %30, %52 : vector<1x128xi32>
    %54 = arith.andi %51, %53 : vector<1x128xi1>
    %55 = vector.shape_cast %54 : vector<1x128xi1> to vector<1x128xi1>
    %56 = vector.broadcast %55 : vector<1x128xi1> to vector<128x128xi1>
    %57 = arith.select %56, %49, %48 : vector<128x128xi1>, vector<128x128xf32>
    %c1_i32 = arith.constant 1 : i32
    %58 = tpu.dynamic_rotate %29 by %c1_i32 dim 0 : vector<128x128xf32>, i32 -> vector<128x128xf32>
    %c32_i32_17 = arith.constant 32 : i32
    %59 = vector.broadcast %c32_i32_17 : i32 to vector<1x128xi32>
    %60 = arith.cmpi sge, %30, %59 : vector<1x128xi32>
    %c40_i32 = arith.constant 40 : i32
    %61 = vector.broadcast %c40_i32 : i32 to vector<1x128xi32>
    %62 = arith.cmpi slt, %30, %61 : vector<1x128xi32>
    %63 = arith.andi %60, %62 : vector<1x128xi1>
    %64 = vector.shape_cast %63 : vector<1x128xi1> to vector<1x128xi1>
    %65 = vector.broadcast %64 : vector<1x128xi1> to vector<128x128xi1>
    %66 = arith.select %65, %58, %57 : vector<128x128xi1>, vector<128x128xf32>
    %c127_i32 = arith.constant 127 : i32
    %67 = tpu.dynamic_rotate %29 by %c127_i32 dim 0 : vector<128x128xf32>, i32 -> vector<128x128xf32>
    %c48_i32 = arith.constant 48 : i32
    %68 = vector.broadcast %c48_i32 : i32 to vector<1x128xi32>
    %69 = arith.cmpi sge, %30, %68 : vector<1x128xi32>
    %c56_i32 = arith.constant 56 : i32
    %70 = vector.broadcast %c56_i32 : i32 to vector<1x128xi32>
    %71 = arith.cmpi slt, %30, %70 : vector<1x128xi32>
    %72 = arith.andi %69, %71 : vector<1x128xi1>
    %73 = vector.shape_cast %72 : vector<1x128xi1> to vector<1x128xi1>
    %74 = vector.broadcast %73 : vector<1x128xi1> to vector<128x128xi1>
    %75 = arith.select %74, %67, %66 : vector<128x128xi1>, vector<128x128xf32>
    %c121_i32 = arith.constant 121 : i32
    %76 = tpu.dynamic_rotate %29 by %c121_i32 dim 0 : vector<128x128xf32>, i32 -> vector<128x128xf32>
    %c56_i32_18 = arith.constant 56 : i32
    %77 = vector.broadcast %c56_i32_18 : i32 to vector<1x128xi32>
    %78 = arith.cmpi sge, %30, %77 : vector<1x128xi32>
    %c64_i32 = arith.constant 64 : i32
    %79 = vector.broadcast %c64_i32 : i32 to vector<1x128xi32>
    %80 = arith.cmpi slt, %30, %79 : vector<1x128xi32>
    %81 = arith.andi %78, %80 : vector<1x128xi1>
    %82 = vector.shape_cast %81 : vector<1x128xi1> to vector<1x128xi1>
    %83 = vector.broadcast %82 : vector<1x128xi1> to vector<128x128xi1>
    %84 = arith.select %83, %76, %75 : vector<128x128xi1>, vector<128x128xf32>
    %c120_i32 = arith.constant 120 : i32
    %85 = tpu.dynamic_rotate %29 by %c120_i32 dim 0 : vector<128x128xf32>, i32 -> vector<128x128xf32>
    %c64_i32_19 = arith.constant 64 : i32
    %86 = vector.broadcast %c64_i32_19 : i32 to vector<1x128xi32>
    %87 = arith.cmpi sge, %30, %86 : vector<1x128xi32>
    %c72_i32 = arith.constant 72 : i32
    %88 = vector.broadcast %c72_i32 : i32 to vector<1x128xi32>
    %89 = arith.cmpi slt, %30, %88 : vector<1x128xi32>
    %90 = arith.andi %87, %89 : vector<1x128xi1>
    %91 = vector.shape_cast %90 : vector<1x128xi1> to vector<1x128xi1>
    %92 = vector.broadcast %91 : vector<1x128xi1> to vector<128x128xi1>
    %93 = arith.select %92, %85, %84 : vector<128x128xi1>, vector<128x128xf32>
    %c119_i32 = arith.constant 119 : i32
    %94 = tpu.dynamic_rotate %29 by %c119_i32 dim 0 : vector<128x128xf32>, i32 -> vector<128x128xf32>
    %c72_i32_20 = arith.constant 72 : i32
    %95 = vector.broadcast %c72_i32_20 : i32 to vector<1x128xi32>
    %96 = arith.cmpi sge, %30, %95 : vector<1x128xi32>
    %c80_i32 = arith.constant 80 : i32
    %97 = vector.broadcast %c80_i32 : i32 to vector<1x128xi32>
    %98 = arith.cmpi slt, %30, %97 : vector<1x128xi32>
    %99 = arith.andi %96, %98 : vector<1x128xi1>
    %100 = vector.shape_cast %99 : vector<1x128xi1> to vector<1x128xi1>
    %101 = vector.broadcast %100 : vector<1x128xi1> to vector<128x128xi1>
    %102 = arith.select %101, %94, %93 : vector<128x128xi1>, vector<128x128xf32>
    %c0_21 = arith.constant 0 : index
    %c0_22 = arith.constant 0 : index
    %103 = vector.load %arg8[%c0_21, %c0_22] : memref<128x128xf32, #tpu.memory_space<vmem>>, vector<128x128xf32>
    %104 = arith.mulf %102, %103 : vector<128x128xf32>
    %c0_23 = arith.constant 0 : index
    %c0_24 = arith.constant 0 : index
    %105 = vector.load %arg5[%c0_23, %c0_24] : memref<128x128xf32, #tpu.memory_space<vmem>>, vector<128x128xf32>
    %cst_25 = arith.constant dense<0.000000e+00> : vector<128x128xf32>
    %106 = tpu.matmul %104, %105, %cst_25 {dimension_numbers = #tpu.dot_dimension_numbers<[1], [0], [0], [1], [0, 0, 1, 1], [], []>} : vector<128x128xf32>, vector<128x128xf32>, vector<128x128xf32> -> vector<128x128xf32>
    %c0_26 = arith.constant 0 : index
    %c0_27 = arith.constant 0 : index
    %107 = vector.load %arg6[%c0_26, %c0_27] : memref<1x128xf32, #tpu.memory_space<vmem>>, vector<1x128xf32>
    %c0_28 = arith.constant 0 : index
    %c0_29 = arith.constant 0 : index
    %108 = vector.load %arg7[%c0_28, %c0_29] : memref<1x128xf32, #tpu.memory_space<vmem>>, vector<1x128xf32>
    %cst_30 = arith.constant dense<0.000000e+00> : vector<128xf32>
    %109 = vector.multi_reduction <add>, %106, %cst_30 [0] : vector<128x128xf32> to vector<128xf32>
    %110 = vector.shape_cast %109 : vector<128xf32> to vector<1x128xf32>
    %cst_31 = arith.constant 7.812500e-03 : f32
    %111 = vector.broadcast %cst_31 : f32 to vector<1x128xf32>
    %112 = arith.mulf %110, %111 : vector<1x128xf32>
    %113 = arith.mulf %106, %106 : vector<128x128xf32>
    %cst_32 = arith.constant dense<0.000000e+00> : vector<128xf32>
    %114 = vector.multi_reduction <add>, %113, %cst_32 [0] : vector<128x128xf32> to vector<128xf32>
    %115 = vector.shape_cast %114 : vector<128xf32> to vector<1x128xf32>
    %cst_33 = arith.constant 7.812500e-03 : f32
    %116 = vector.broadcast %cst_33 : f32 to vector<1x128xf32>
    %117 = arith.mulf %115, %116 : vector<1x128xf32>
    %118 = arith.mulf %112, %112 : vector<1x128xf32>
    %119 = arith.subf %117, %118 : vector<1x128xf32>
    %cst_34 = arith.constant 0.000000e+00 : f32
    %120 = vector.broadcast %cst_34 : f32 to vector<1x128xf32>
    %121 = arith.maximumf %119, %120 : vector<1x128xf32>
    %cst_35 = arith.constant 9.99999974E-6 : f32
    %122 = vector.broadcast %cst_35 : f32 to vector<1x128xf32>
    %123 = arith.addf %121, %122 : vector<1x128xf32>
    %124 = math.rsqrt %123 : vector<1x128xf32>
    %125 = arith.mulf %107, %124 : vector<1x128xf32>
    %126 = arith.mulf %112, %125 : vector<1x128xf32>
    %127 = arith.subf %108, %126 : vector<1x128xf32>
    %128 = vector.broadcast %125 : vector<1x128xf32> to vector<128x128xf32>
    %129 = arith.mulf %106, %128 : vector<128x128xf32>
    %130 = vector.broadcast %127 : vector<1x128xf32> to vector<128x128xf32>
    %131 = arith.addf %129, %130 : vector<128x128xf32>
    %c8_i32_36 = arith.constant 8 : i32
    %132 = vector.broadcast %c8_i32_36 : i32 to vector<1x128xi32>
    %133 = arith.cmpi slt, %30, %132 : vector<1x128xi32>
    %cst_37 = arith.constant 0.000000e+00 : f32
    %134 = vector.shape_cast %133 : vector<1x128xi1> to vector<1x128xi1>
    %135 = vector.broadcast %134 : vector<1x128xi1> to vector<128x128xi1>
    %136 = vector.broadcast %cst_37 : f32 to vector<128x128xf32>
    %137 = arith.select %135, %27, %136 : vector<128x128xi1>, vector<128x128xf32>
    %138 = arith.addf %131, %137 : vector<128x128xf32>
    %cst_38 = arith.constant 0.000000e+00 : f32
    %139 = vector.broadcast %cst_38 : f32 to vector<128x128xf32>
    %140 = arith.maximumf %138, %139 : vector<128x128xf32>
    %c0_39 = arith.constant 0 : index
    %c0_40 = arith.constant 0 : index
    %141 = vector.load %arg9[%c0_39, %c0_40] : memref<128x128xf32, #tpu.memory_space<vmem>>, vector<128x128xf32>
    tpu.vector_store %arg9[%c0_39, %c0_40], %140 {strides = array<i32>} : memref<128x128xf32, #tpu.memory_space<vmem>>, vector<128x128xf32>,
    return
  }
  func.func @transform_0(%arg0: i32) -> (i32, i32) {
    %c0_i32 = arith.constant 0 : i32
    %c0_i32_0 = arith.constant 0 : i32
    %c0_i32_1 = arith.constant 0 : i32
    return %c0_i32, %c0_i32_0 : i32, i32
  }
  func.func @transform_1(%arg0: i32) -> (i32, i32) {
    %c0_i32 = arith.constant 0 : i32
    %c0_i32_0 = arith.constant 0 : i32
    %c0_i32_1 = arith.constant 0 : i32
    return %c0_i32, %c0_i32_0 : i32, i32
  }
  func.func @transform_2(%arg0: i32) -> (i32, i32) {
    %c0_i32 = arith.constant 0 : i32
    %c0_i32_0 = arith.constant 0 : i32
    %c0_i32_1 = arith.constant 0 : i32
    return %c0_i32, %c0_i32_0 : i32, i32
  }
  func.func @transform_3(%arg0: i32) -> (i32, i32) {
    %c0_i32 = arith.constant 0 : i32
    %c0_i32_0 = arith.constant 0 : i32
    %c0_i32_1 = arith.constant 0 : i32
    return %c0_i32, %c0_i32_0 : i32, i32
  }
  func.func @transform_4(%arg0: i32) -> (i32, i32) {
    %c0_i32 = arith.constant 0 : i32
    %c0_i32_0 = arith.constant 0 : i32
    %c0_i32_1 = arith.constant 0 : i32
    return %c0_i32, %c0_i32_0 : i32, i32
  }
  func.func @transform_5(%arg0: i32) -> (i32, i32) {
    %c0_i32 = arith.constant 0 : i32
    %c0_i32_0 = arith.constant 0 : i32
    %c0_i32_1 = arith.constant 0 : i32
    return %c0_i32, %c0_i32_0 : i32, i32
  }
  func.func @transform_6(%arg0: i32) -> (i32, i32) {
    %c0_i32 = arith.constant 0 : i32
    %c0_i32_0 = arith.constant 0 : i32
    %c0_i32_1 = arith.constant 0 : i32
    return %c0_i32, %c0_i32_0 : i32, i32
  }
  func.func @transform_7(%arg0: i32) -> (i32, i32) {
    %c0_i32 = arith.constant 0 : i32
    %c0_i32_0 = arith.constant 0 : i32
    %c0_i32_1 = arith.constant 0 : i32
    return %c0_i32, %c0_i32_0 : i32, i32
  }
  func.func @transform_8(%arg0: i32) -> (i32, i32) {
    %c0_i32 = arith.constant 0 : i32
    %c0_i32_0 = arith.constant 0 : i32
    %c0_i32_1 = arith.constant 0 : i32
    return %c0_i32, %c0_i32_0 : i32, i32
  }
}

</mosaic_0001>

<llo_original>
// kernel: tpu_custom_call.1
$region0: #{tpu_custom_call.1}
  #allocation0 [shape = 'u32[]', space=smem, size = 0x4, offset = 0x4, fixed_abs, tag = 'smem constant byte address 0x4 - core index']
  #allocation1 [shape = 'u32[144,128]{1,0:T(1,128)}', space=vmem, size = 0x12000, scoped, tag = 'internal scratch']
  %s0 = inlined_call_operand.vmem [shape: f32[128,40], index: 0, kind: input, shape index: {}]
  %s1 = inlined_call_operand.vmem [shape: f32[40,128], index: 1, kind: input, shape index: {}]
  %s2 = inlined_call_operand.vmem [shape: f32[1,128], index: 2, kind: input, shape index: {}]
  %s3 = inlined_call_operand.vmem [shape: f32[1,128], index: 3, kind: input, shape index: {}]
  %s4 = inlined_call_operand.vmem [shape: f32[128,128], index: 4, kind: input, shape index: {}]
  %s5 = inlined_call_operand.vmem [shape: f32[1,128], index: 5, kind: input, shape index: {}]
  %s6 = inlined_call_operand.vmem [shape: f32[1,128], index: 6, kind: input, shape index: {}]
  %s7 = inlined_call_operand.hbm [shape: f32[128,128], index: 7, kind: input, shape index: {}]
  %s8 = inlined_call_operand.hbm [shape: f32[128,128], index: 8, kind: output, shape index: {}]
  %s9 = sld [smem:[#allocation0]]
  $region46: #{tpu_custom_call.1} parent=0
    _
  %s11 = ssub.s32 1, %s9
  %s12 = scalar_select 0, %s11, %s9
  $region1: #{tpu_custom_call.1} parent=0
    #allocation2 [shape = 'u8[65536]{0}', space=vmem, size = 0x10000, scoped, tag = 'input window, operand 7, single buffered']
    #allocation3 [shape = 's32[1]{0}', space=sflag, size = 0x4, scoped, tag = 'scoped memory for tpu_custom_call.1']
    #allocation4 [shape = 's32[1]{0}', space=sflag, size = 0x4, scoped, tag = 'scoped memory for tpu_custom_call.1']
    #allocation5 [shape = 'u8[65536]{0}', space=vmem, size = 0x10000, scoped, tag = 'output window, operand 0, single buffered']
    %13 = vsyncpa [#allocation3], 0
    %14 = vsyncpa [#allocation4], 0
    // Predicated region
    $region2: #{tpu_custom_call.1} parent=1 // pred_check
      _
    $region3: #{tpu_custom_call.1} parent=1 // pred_check_branch
      %16 = sbr.rel (0) target = $region5
    $region4: #{tpu_custom_call.1} parent=1 // pred_region
      _
    $region5: #{tpu_custom_call.1} parent=1 // pred_fallthru
      _
    // Predicated region
    $region6: #{tpu_custom_call.1} parent=1 // pred_check
      _
    $region7: #{tpu_custom_call.1} parent=1 // pred_check_branch
      %18 = sbr.rel (0) target = $region9
    $region8: #{tpu_custom_call.1} parent=1 // pred_region
      _
    $region9: #{tpu_custom_call.1} parent=1 // pred_fallthru
      _
    // Predicated region
    $region10: #{tpu_custom_call.1} parent=1 // pred_check
      _
    $region11: #{tpu_custom_call.1} parent=1 // pred_check_branch
      %20 = sbr.rel (0) target = $region13
    $region12: #{tpu_custom_call.1} parent=1 // pred_region
      _
    $region13: #{tpu_custom_call.1} parent=1 // pred_fallthru
      _
    // Predicated region
    $region14: #{tpu_custom_call.1} parent=1 // pred_check
      _
    $region15: #{tpu_custom_call.1} parent=1 // pred_check_branch
      %22 = sbr.rel (0) target = $region17
    $region16: #{tpu_custom_call.1} parent=1 // pred_region
      _
    $region17: #{tpu_custom_call.1} parent=1 // pred_fallthru
      _
    // Predicated region
    $region18: #{tpu_custom_call.1} parent=1 // pred_check
      _
    $region19: #{tpu_custom_call.1} parent=1 // pred_check_branch
      %24 = sbr.rel (0) target = $region21
    $region20: #{tpu_custom_call.1} parent=1 // pred_region
      _
    $region21: #{tpu_custom_call.1} parent=1 // pred_fallthru
      _
    // Predicated region
    $region22: #{tpu_custom_call.1} parent=1 // pred_check
      _
    $region23: #{tpu_custom_call.1} parent=1 // pred_check_branch
      %26 = sbr.rel (0) target = $region25
    $region24: #{tpu_custom_call.1} parent=1 // pred_region
      _
    $region25: #{tpu_custom_call.1} parent=1 // pred_fallthru
      _
    // Predicated region
    $region26: #{tpu_custom_call.1} parent=1 // pred_check
      _
    $region27: #{tpu_custom_call.1} parent=1 // pred_check_branch
      %28 = sbr.rel (0) target = $region29
    $region28: #{tpu_custom_call.1} parent=1 // pred_region
      _
    $region29: #{tpu_custom_call.1} parent=1 // pred_fallthru
      _
    // Predicated region
    $region30: #{tpu_custom_call.1} parent=1 // pred_check
      _
    $region31: #{tpu_custom_call.1} parent=1 // pred_check_branch
      %30 = sbr.rel (0) target = $region33
    $region32: #{tpu_custom_call.1} parent=1 // pred_region
      %s32 = ssub.s32 2048, 2048
      %33 = vsyncadd [#allocation3], %s32
      %s34 = sshll.u32 [#allocation2], 4
      %s35 = int_to_ptr.vmem [resolvable:$true] %s34
      %40 = dma.hbm_to_vmem [thread:$0]  %s7, 2048, %s35, [#allocation3], 128, 128, 8
    $region33: #{tpu_custom_call.1} parent=1 // pred_fallthru
      _
    // Predicated region
    $region34: #{tpu_custom_call.1} parent=1 // pred_check
      _
    $region35: #{tpu_custom_call.1} parent=1 // pred_check_branch
      %42 = sbr.rel (0) target = $region37
    $region36: #{tpu_custom_call.1} parent=1 // pred_region
      %43 = dma.done [#allocation3], 2048
    $region37: #{tpu_custom_call.1} parent=1 // pred_fallthru
      _
    %v44 = vld [vmem:[%s0] sm:$0xff]
    %v45 = vld [vmem:[%s0 + $0x8] sm:$0xff]
    %v46 = vld [vmem:[%s0 + $0x10] sm:$0xff]
    %v47 = vld [vmem:[%s0 + $0x18] sm:$0xff]
    %v48 = vld [vmem:[%s0 + $0x20] sm:$0xff]
    %v49 = vld [vmem:[%s0 + $0x28] sm:$0xff]
    %v50 = vld [vmem:[%s0 + $0x30] sm:$0xff]
    %v51 = vld [vmem:[%s0 + $0x38] sm:$0xff]
    %v52 = vld [vmem:[%s0 + $0x40] sm:$0xff]
    %v53 = vld [vmem:[%s0 + $0x48] sm:$0xff]
    %v54 = vld [vmem:[%s0 + $0x50] sm:$0xff]
    %v55 = vld [vmem:[%s0 + $0x58] sm:$0xff]
    %v56 = vld [vmem:[%s0 + $0x60] sm:$0xff]
    %v57 = vld [vmem:[%s0 + $0x68] sm:$0xff]
    %v58 = vld [vmem:[%s0 + $0x70] sm:$0xff]
    %v59 = vld [vmem:[%s0 + $0x78] sm:$0xff]
    %v60 = vld [vmem:[%s1] sm:$0xff]
    %v61 = vld [vmem:[%s1 + $0x8] sm:$0xff]
    %v62 = vld [vmem:[%s1 + $0x10] sm:$0xff]
    %v63 = vld [vmem:[%s1 + $0x18] sm:$0xff]
    %v64 = vld [vmem:[%s1 + $0x20] sm:$0xff]
    %vm65 = vcmask 326656
    %v67 = vsel %vm65, %v44, 0
    %v70 = vsel %vm65, %v45, 0
    %v73 = vsel %vm65, %v46, 0
    %v76 = vsel %vm65, %v47, 0
    %v79 = vsel %vm65, %v48, 0
    %v82 = vsel %vm65, %v49, 0
    %v85 = vsel %vm65, %v50, 0
    %v88 = vsel %vm65, %v51, 0
    %v91 = vsel %vm65, %v52, 0
    %v94 = vsel %vm65, %v53, 0
    %v97 = vsel %vm65, %v54, 0
    %v100 = vsel %vm65, %v55, 0
    %v103 = vsel %vm65, %v56, 0
    %v106 = vsel %vm65, %v57, 0
    %v109 = vsel %vm65, %v58, 0
    %v112 = vsel %vm65, %v59, 0
    %114 = vmatprep.subr.mxu0 0.0
    %115 = vmatpush1.msra.mxu0 %v60
    %116 = vmatprep.subr.mxu0 0.0
    %117 = vmatpush1.msra.mxu0 %v61
    %118 = vmatprep.subr.mxu0 0.0
    %119 = vmatpush1.msra.mxu0 %v62
    %120 = vmatprep.subr.mxu0 0.0
    %121 = vmatpush1.msra.mxu0 %v63
    %122 = vmatprep.subr.mxu0 0.0
    %123 = vmatpush1.msra.mxu0 %v64
    %124 = vmatprep.subr.mxu0 0.0
    %125 = vmatpush1.msra.mxu0 0.0
    %126 = vmatprep.subr.mxu0 0.0
    %127 = vmatpush1.msra.mxu0 0.0
    %128 = vmatprep.subr.mxu0 0.0
    %129 = vmatpush1.msra.mxu0 0.0
    %130 = vmatprep.subr.mxu0 0.0
    %131 = vmatpush1.msra.mxu0 0.0
    %132 = vmatprep.subr.mxu0 0.0
    %133 = vmatpush1.msra.mxu0 0.0
    %134 = vmatprep.subr.mxu0 0.0
    %135 = vmatpush1.msra.mxu0 0.0
    %136 = vmatprep.subr.mxu0 0.0
    %137 = vmatpush1.msra.mxu0 0.0
    %138 = vmatprep.subr.mxu0 0.0
    %139 = vmatpush1.msra.mxu0 0.0
    %140 = vmatprep.subr.mxu0 0.0
    %141 = vmatpush1.msra.mxu0 0.0
    %142 = vmatprep.subr.mxu0 0.0
    %143 = vmatpush1.msra.mxu0 0.0
    %144 = vmatprep.subr.mxu0 0.0
    %145 = vmatpush1.msra.mxu0 0.0
    %146 = vmatprep.subr.mxu0 0.0
    %147 = vmatpush1.msra.mxu0 0.0
    %148 = vmatprep.subr.mxu0 0.0
    %149 = vmatpush1.msra.mxu0 0.0
    %150 = vmatprep.subr.mxu0 0.0
    %151 = vmatpush1.msra.mxu0 0.0
    %152 = vmatprep.subr.mxu0 0.0
    %153 = vmatpush1.msra.mxu0 0.0
    %154 = vmatprep.subr.mxu0 0.0
    %155 = vmatpush1.msra.mxu0 0.0
    %156 = vmatprep.subr.mxu0 0.0
    %157 = vmatpush1.msra.mxu0 0.0
    %158 = vmatprep.subr.mxu0 0.0
    %159 = vmatpush1.msra.mxu0 0.0
    %160 = vmatprep.subr.mxu0 0.0
    %161 = vmatpush1.msra.mxu0 0.0
    %162 = vmatprep.subr.mxu0 0.0
    %163 = vmatpush1.msra.mxu0 0.0
    %164 = vmatprep.subr.mxu0 0.0
    %165 = vmatpush1.msra.mxu0 0.0
    %166 = vmatprep.subr.mxu0 0.0
    %167 = vmatpush1.msra.mxu0 0.0
    %168 = vmatprep.subr.mxu0 0.0
    %169 = vmatpush1.msra.mxu0 0.0
    %170 = vmatprep.subr.mxu0 0.0
    %171 = vmatpush1.msra.mxu0 0.0
    %172 = vmatprep.subr.mxu0 0.0
    %173 = vmatpush1.msra.mxu0 0.0
    %174 = vmatprep.subr.mxu0 0.0
    %175 = vmatpush1.msra.mxu0 0.0
    %176 = vmatprep.subr.mxu0 0.0
    %177 = vmatpush1.msra.mxu0 0.0
    %178 = vmatprep.mubr.f32.mxu0 0.0
    %179 = vmatmul.mubr.f32.gmra.mrb[0].mxu0 %v67
    %v180 = vpop.f32.mrb[0].mxu0
    %v181 = vadd.f32 0.0, %v180
    %v182 = vpop.f32.mrb[0].mxu0
    %183 = vmatprep.mubr.f32.mxu0 0.0
    %184 = vmatmul.mubr.f32.gmra.mrb[0].mxu0 %v70
    %v185 = vpop.f32.mrb[0].mxu0
    %v186 = vadd.f32 0.0, %v185
    %v187 = vpop.f32.mrb[0].mxu0
    %188 = vmatprep.mubr.f32.mxu0 0.0
    %189 = vmatmul.mubr.f32.gmra.mrb[0].mxu0 %v73
    %v190 = vpop.f32.mrb[0].mxu0
    %v191 = vadd.f32 0.0, %v190
    %v192 = vpop.f32.mrb[0].mxu0
    %193 = vmatprep.mubr.f32.mxu0 0.0
    %194 = vmatmul.mubr.f32.gmra.mrb[0].mxu0 %v76
    %v195 = vpop.f32.mrb[0].mxu0
    %v196 = vadd.f32 0.0, %v195
    %v197 = vpop.f32.mrb[0].mxu0
    %198 = vmatprep.mubr.f32.mxu0 0.0
    %199 = vmatmul.mubr.f32.gmra.mrb[0].mxu0 %v79
    %v200 = vpop.f32.mrb[0].mxu0
    %v201 = vadd.f32 0.0, %v200
    %v202 = vpop.f32.mrb[0].mxu0
    %203 = vmatprep.mubr.f32.mxu0 0.0
    %204 = vmatmul.mubr.f32.gmra.mrb[0].mxu0 %v82
    %v205 = vpop.f32.mrb[0].mxu0
    %v206 = vadd.f32 0.0, %v205
    %v207 = vpop.f32.mrb[0].mxu0
    %208 = vmatprep.mubr.f32.mxu0 0.0
    %209 = vmatmul.mubr.f32.gmra.mrb[0].mxu0 %v85
    %v210 = vpop.f32.mrb[0].mxu0
    %v211 = vadd.f32 0.0, %v210
    %v212 = vpop.f32.mrb[0].mxu0
    %213 = vmatprep.mubr.f32.mxu0 0.0
    %214 = vmatmul.mubr.f32.gmra.mrb[0].mxu0 %v88
    %v215 = vpop.f32.mrb[0].mxu0
    %v216 = vadd.f32 0.0, %v215
    %v217 = vpop.f32.mrb[0].mxu0
    %218 = vmatprep.mubr.f32.mxu0 0.0
    %219 = vmatmul.mubr.f32.gmra.mrb[0].mxu0 %v91
    %v220 = vpop.f32.mrb[0].mxu0
    %v221 = vadd.f32 0.0, %v220
    %v222 = vpop.f32.mrb[0].mxu0
    %223 = vmatprep.mubr.f32.mxu0 0.0
    %224 = vmatmul.mubr.f32.gmra.mrb[0].mxu0 %v94
    %v225 = vpop.f32.mrb[0].mxu0
    %v226 = vadd.f32 0.0, %v225
    %v227 = vpop.f32.mrb[0].mxu0
    %228 = vmatprep.mubr.f32.mxu0 0.0
    %229 = vmatmul.mubr.f32.gmra.mrb[0].mxu0 %v97
    %v230 = vpop.f32.mrb[0].mxu0
    %v231 = vadd.f32 0.0, %v230
    %v232 = vpop.f32.mrb[0].mxu0
    %233 = vmatprep.mubr.f32.mxu0 0.0
    %234 = vmatmul.mubr.f32.gmra.mrb[0].mxu0 %v100
    %v235 = vpop.f32.mrb[0].mxu0
    %v236 = vadd.f32 0.0, %v235
    %v237 = vpop.f32.mrb[0].mxu0
    %238 = vmatprep.mubr.f32.mxu0 0.0
    %239 = vmatmul.mubr.f32.gmra.mrb[0].mxu0 %v103
    %v240 = vpop.f32.mrb[0].mxu0
    %v241 = vadd.f32 0.0, %v240
    %v242 = vpop.f32.mrb[0].mxu0
    %243 = vmatprep.mubr.f32.mxu0 0.0
    %244 = vmatmul.mubr.f32.gmra.mrb[0].mxu0 %v106
    %v245 = vpop.f32.mrb[0].mxu0
    %v246 = vadd.f32 0.0, %v245
    %v247 = vpop.f32.mrb[0].mxu0
    %248 = vmatprep.mubr.f32.mxu0 0.0
    %249 = vmatmul.mubr.f32.gmra.mrb[0].mxu0 %v109
    %v250 = vpop.f32.mrb[0].mxu0
    %v251 = vadd.f32 0.0, %v250
    %v252 = vpop.f32.mrb[0].mxu0
    %253 = vmatprep.mubr.f32.mxu0 0.0
    %254 = vmatmul.mubr.f32.gmra.mrb[0].mxu0 %v112
    %v255 = vpop.f32.mrb[0].mxu0
    %v256 = vadd.f32 0.0, %v255
    %v257 = vpop.f32.mrb[0].mxu0
    %258 = vdwg.mxu0
    %v259 = vld [vmem:[%s2] sm:$0x1]
    %v260 = vld [vmem:[%s3] sm:$0x1]
    %v261 = vadd.f32 %v181, %v186
    %v262 = vadd.f32 %v261, %v191
    %v263 = vadd.f32 %v262, %v196
    %v264 = vadd.f32 %v263, %v201
    %v265 = vadd.f32 %v264, %v206
    %v266 = vadd.f32 %v265, %v211
    %v267 = vadd.f32 %v266, %v216
    %v268 = vadd.f32 %v267, %v221
    %v269 = vadd.f32 %v268, %v226
    %v270 = vadd.f32 %v269, %v231
    %v271 = vadd.f32 %v270, %v236
    %v272 = vadd.f32 %v271, %v241
    %v273 = vadd.f32 %v272, %v246
    %v274 = vadd.f32 %v273, %v251
    %v275 = vadd.f32 %v274, %v256
    %v276 = vrot.slane %v275, 4
    %v277 = vadd.f32 %v275, %v276
    %v278 = vrot.slane %v277, 2
    %v279 = vadd.f32 %v277, %v278
    %v280 = vrot.slane %v279, 1
    %v281 = vadd.f32 %v279, %v280
    %v282 = vmul.f32 %v281, 0.0078125
    %v283 = vmul.f32 %v181, %v181
    %v284 = vmul.f32 %v186, %v186
    %v285 = vmul.f32 %v191, %v191
    %v286 = vmul.f32 %v196, %v196
    %v287 = vmul.f32 %v201, %v201
    %v288 = vmul.f32 %v206, %v206
    %v289 = vmul.f32 %v211, %v211
    %v290 = vmul.f32 %v216, %v216
    %v291 = vmul.f32 %v221, %v221
    %v292 = vmul.f32 %v226, %v226
    %v293 = vmul.f32 %v231, %v231
    %v294 = vmul.f32 %v236, %v236
    %v295 = vmul.f32 %v241, %v241
    %v296 = vmul.f32 %v246, %v246
    %v297 = vmul.f32 %v251, %v251
    %v298 = vmul.f32 %v256, %v256
    %v299 = vadd.f32 %v283, %v284
    %v300 = vadd.f32 %v299, %v285
    %v301 = vadd.f32 %v300, %v286
    %v302 = vadd.f32 %v301, %v287
    %v303 = vadd.f32 %v302, %v288
    %v304 = vadd.f32 %v303, %v289
    %v305 = vadd.f32 %v304, %v290
    %v306 = vadd.f32 %v305, %v291
    %v307 = vadd.f32 %v306, %v292
    %v308 = vadd.f32 %v307, %v293
    %v309 = vadd.f32 %v308, %v294
    %v310 = vadd.f32 %v309, %v295
    %v311 = vadd.f32 %v310, %v296
    %v312 = vadd.f32 %v311, %v297
    %v313 = vadd.f32 %v312, %v298
    %v314 = vrot.slane %v313, 4
    %v315 = vadd.f32 %v313, %v314
    %v316 = vrot.slane %v315, 2
    %v317 = vadd.f32 %v315, %v316
    %v318 = vrot.slane %v317, 1
    %v319 = vadd.f32 %v317, %v318
    %v320 = vmul.f32 %v319, 0.0078125
    %v321 = vmul.f32 %v282, %v282
    %v322 = vsub.f32 %v320, %v321
    %v323 = vmax.f32 %v322, 0.0
    %v324 = vadd.f32 %v323, 1e-05
    %v325 = vrsqrt.pop %v324
    %v326 = vmul.f32 %v259, %v325
    %v327 = vmul.f32 %v282, %v326
    %v328 = vsub.f32 %v260, %v327
    %v330 = vlaneseq
    %v331 = vshrl.u32 %v330, 7
    %v332 = vsub.s32 0, %v331
    %v333 = vrot.slane %v326, %v332
    %v335 = vmul.f32 %v181, %v333
    %v336 = vmul.f32 %v186, %v333
    %v337 = vmul.f32 %v191, %v333
    %v338 = vmul.f32 %v196, %v333
    %v339 = vmul.f32 %v201, %v333
    %v340 = vmul.f32 %v206, %v333
    %v341 = vmul.f32 %v211, %v333
    %v342 = vmul.f32 %v216, %v333
    %v343 = vmul.f32 %v221, %v333
    %v344 = vmul.f32 %v226, %v333
    %v345 = vmul.f32 %v231, %v333
    %v346 = vmul.f32 %v236, %v333
    %v347 = vmul.f32 %v241, %v333
    %v348 = vmul.f32 %v246, %v333
    %v349 = vmul.f32 %v251, %v333
    %v350 = vmul.f32 %v256, %v333
    %v352 = vlaneseq
    %v353 = vshrl.u32 %v352, 7
    %v354 = vsub.s32 0, %v353
    %v355 = vrot.slane %v328, %v354
    %v357 = vadd.f32 %v335, %v355
    %v358 = vadd.f32 %v336, %v355
    %v359 = vadd.f32 %v337, %v355
    %v360 = vadd.f32 %v338, %v355
    %v361 = vadd.f32 %v339, %v355
    %v362 = vadd.f32 %v340, %v355
    %v363 = vadd.f32 %v341, %v355
    %v364 = vadd.f32 %v342, %v355
    %v365 = vadd.f32 %v343, %v355
    %v366 = vadd.f32 %v344, %v355
    %v367 = vadd.f32 %v345, %v355
    %v368 = vadd.f32 %v346, %v355
    %v369 = vadd.f32 %v347, %v355
    %v370 = vadd.f32 %v348, %v355
    %v371 = vadd.f32 %v349, %v355
    %v372 = vadd.f32 %v350, %v355
    %v373 = vmax.f32 %v357, 0.0
    %v374 = vmax.f32 %v358, 0.0
    %v375 = vmax.f32 %v359, 0.0
    %v376 = vmax.f32 %v360, 0.0
    %v377 = vmax.f32 %v361, 0.0
    %v378 = vmax.f32 %v362, 0.0
    %v379 = vmax.f32 %v363, 0.0
    %v380 = vmax.f32 %v364, 0.0
    %v381 = vmax.f32 %v365, 0.0
    %v382 = vmax.f32 %v366, 0.0
    %v383 = vmax.f32 %v367, 0.0
    %v384 = vmax.f32 %v368, 0.0
    %v385 = vmax.f32 %v369, 0.0
    %v386 = vmax.f32 %v370, 0.0
    %v387 = vmax.f32 %v371, 0.0
    %v388 = vmax.f32 %v372, 0.0
    %v389 = vlaneseq
    %v390 = vand.u32 %v389, 127
    %v391 = vrot.slane %v373, 7
    %v392 = vrot.slane %v374, 7
    %v393 = vrot.slane %v375, 7
    %v394 = vrot.slane %v376, 7
    %v395 = vrot.slane %v377, 7
    %v396 = vrot.slane %v378, 7
    %v397 = vrot.slane %v379, 7
    %v398 = vrot.slane %v380, 7
    %v399 = vrot.slane %v381, 7
    %v400 = vrot.slane %v382, 7
    %v401 = vrot.slane %v383, 7
    %v402 = vrot.slane %v384, 7
    %v403 = vrot.slane %v385, 7
    %v404 = vrot.slane %v386, 7
    %v405 = vrot.slane %v387, 7
    %v406 = vrot.slane %v388, 7
    %v407 = vlaneseq
    %v408 = vshrl.u32 %v407, 7
    %vm409 = vcmp.lt.s32.totalorder %v408, 1
    %v410 = vsel %vm409, %v405, %v406
    %v411 = vsel %vm409, %v404, %v405
    %v412 = vsel %vm409, %v403, %v404
    %v413 = vsel %vm409, %v402, %v403
    %v414 = vsel %vm409, %v401, %v402
    %v415 = vsel %vm409, %v400, %v401
    %v416 = vsel %vm409, %v399, %v400
    %v417 = vsel %vm409, %v398, %v399
    %v418 = vsel %vm409, %v397, %v398
    %v419 = vsel %vm409, %v396, %v397
    %v420 = vsel %vm409, %v395, %v396
    %v421 = vsel %vm409, %v394, %v395
    %v422 = vsel %vm409, %v393, %v394
    %v423 = vsel %vm409, %v392, %v393
    %v424 = vsel %vm409, %v391, %v392
    %v425 = vsel %vm409, %v406, %v391
    %vm426 = vcmp.ge.s32.totalorder %v390, 8
    %vm427 = vcmp.lt.s32.totalorder %v390, 16
    %vm428 = vmand %vm426, %vm427
    %v429 = vsel %vm428, 1, 0
    %vm430 = vcmp.eq.s32.totalorder %v429, 1
    %v431 = vsel %vm430, %v410, %v373
    %v432 = vsel %vm430, %v425, %v374
    %v433 = vsel %vm430, %v424, %v375
    %v434 = vsel %vm430, %v423, %v376
    %v435 = vsel %vm430, %v422, %v377
    %v436 = vsel %vm430, %v421, %v378
    %v437 = vsel %vm430, %v420, %v379
    %v438 = vsel %vm430, %v419, %v380
    %v439 = vsel %vm430, %v418, %v381
    %v440 = vsel %vm430, %v417, %v382
    %v441 = vsel %vm430, %v416, %v383
    %v442 = vsel %vm430, %v415, %v384
    %v443 = vsel %vm430, %v414, %v385
    %v444 = vsel %vm430, %v413, %v386
    %v445 = vsel %vm430, %v412, %v387
    %v446 = vsel %vm430, %v411, %v388
    %vm447 = vcmp.ge.s32.totalorder %v390, 16
    %vm448 = vcmp.lt.s32.totalorder %v390, 24
    %vm449 = vmand %vm447, %vm448
    %v450 = vsel %vm449, 1, 0
    %vm451 = vcmp.eq.s32.totalorder %v450, 1
    %v452 = vsel %vm451, %v388, %v431
    %v453 = vsel %vm451, %v373, %v432
    %v454 = vsel %vm451, %v374, %v433
    %v455 = vsel %vm451, %v375, %v434
    %v456 = vsel %vm451, %v376, %v435
    %v457 = vsel %vm451, %v377, %v436
    %v458 = vsel %vm451, %v378, %v437
    %v459 = vsel %vm451, %v379, %v438
    %v460 = vsel %vm451, %v380, %v439
    %v461 = vsel %vm451, %v381, %v440
    %v462 = vsel %vm451, %v382, %v441
    %v463 = vsel %vm451, %v383, %v442
    %v464 = vsel %vm451, %v384, %v443
    %v465 = vsel %vm451, %v385, %v444
    %v466 = vsel %vm451, %v386, %v445
    %v467 = vsel %vm451, %v387, %v446
    %v468 = vrot.slane %v373, 1
    %v469 = vrot.slane %v374, 1
    %v470 = vrot.slane %v375, 1
    %v471 = vrot.slane %v376, 1
    %v472 = vrot.slane %v377, 1
    %v473 = vrot.slane %v378, 1
    %v474 = vrot.slane %v379, 1
    %v475 = vrot.slane %v380, 1
    %v476 = vrot.slane %v381, 1
    %v477 = vrot.slane %v382, 1
    %v478 = vrot.slane %v383, 1
    %v479 = vrot.slane %v384, 1
    %v480 = vrot.slane %v385, 1
    %v481 = vrot.slane %v386, 1
    %v482 = vrot.slane %v387, 1
    %v483 = vrot.slane %v388, 1
    %vm484 = vcmp.lt.s32.totalorder %v408, 7
    %v485 = vsel %vm484, %v482, %v483
    %v486 = vsel %vm484, %v481, %v482
    %v487 = vsel %vm484, %v480, %v481
    %v488 = vsel %vm484, %v479, %v480
    %v489 = vsel %vm484, %v478, %v479
    %v490 = vsel %vm484, %v477, %v478
    %v491 = vsel %vm484, %v476, %v477
    %v492 = vsel %vm484, %v475, %v476
    %v493 = vsel %vm484, %v474, %v475
    %v494 = vsel %vm484, %v473, %v474
    %v495 = vsel %vm484, %v472, %v473
    %v496 = vsel %vm484, %v471, %v472
    %v497 = vsel %vm484, %v470, %v471
    %v498 = vsel %vm484, %v469, %v470
    %v499 = vsel %vm484, %v468, %v469
    %v500 = vsel %vm484, %v483, %v468
    %vm501 = vcmp.ge.s32.totalorder %v390, 24
    %vm502 = vcmp.lt.s32.totalorder %v390, 32
    %vm503 = vmand %vm501, %vm502
    %v504 = vsel %vm503, 1, 0
    %vm505 = vcmp.eq.s32.totalorder %v504, 1
    %v506 = vsel %vm505, %v500, %v452
    %v507 = vsel %vm505, %v499, %v453
    %v508 = vsel %vm505, %v498, %v454
    %v509 = vsel %vm505, %v497, %v455
    %v510 = vsel %vm505, %v496, %v456
    %v511 = vsel %vm505, %v495, %v457
    %v512 = vsel %vm505, %v494, %v458
    %v513 = vsel %vm505, %v493, %v459
    %v514 = vsel %vm505, %v492, %v460
    %v515 = vsel %vm505, %v491, %v461
    %v516 = vsel %vm505, %v490, %v462
    %v517 = vsel %vm505, %v489, %v463
    %v518 = vsel %vm505, %v488, %v464
    %v519 = vsel %vm505, %v487, %v465
    %v520 = vsel %vm505, %v486, %v466
    %v521 = vsel %vm505, %v485, %v467
    %vm522 = vcmp.ge.s32.totalorder %v390, 32
    %vm523 = vcmp.lt.s32.totalorder %v390, 40
    %vm524 = vmand %vm522, %vm523
    %v525 = vsel %vm524, 1, 0
    %vm526 = vcmp.eq.s32.totalorder %v525, 1
    %v527 = vsel %vm526, %v425, %v506
    %v528 = vsel %vm526, %v424, %v507
    %v529 = vsel %vm526, %v423, %v508
    %v530 = vsel %vm526, %v422, %v509
    %v531 = vsel %vm526, %v421, %v510
    %v532 = vsel %vm526, %v420, %v511
    %v533 = vsel %vm526, %v419, %v512
    %v534 = vsel %vm526, %v418, %v513
    %v535 = vsel %vm526, %v417, %v514
    %v536 = vsel %vm526, %v416, %v515
    %v537 = vsel %vm526, %v415, %v516
    %v538 = vsel %vm526, %v414, %v517
    %v539 = vsel %vm526, %v413, %v518
    %v540 = vsel %vm526, %v412, %v519
    %v541 = vsel %vm526, %v411, %v520
    %v542 = vsel %vm526, %v410, %v521
    %vm543 = vcmp.ge.s32.totalorder %v390, 48
    %vm544 = vcmp.lt.s32.totalorder %v390, 56
    %vm545 = vmand %vm543, %vm544
    %v546 = vsel %vm545, 1, 0
    %vm547 = vcmp.eq.s32.totalorder %v546, 1
    %v548 = vsel %vm547, %v499, %v527
    %v549 = vsel %vm547, %v498, %v528
    %v550 = vsel %vm547, %v497, %v529
    %v551 = vsel %vm547, %v496, %v530
    %v552 = vsel %vm547, %v495, %v531
    %v553 = vsel %vm547, %v494, %v532
    %v554 = vsel %vm547, %v493, %v533
    %v555 = vsel %vm547, %v492, %v534
    %v556 = vsel %vm547, %v491, %v535
    %v557 = vsel %vm547, %v490, %v536
    %v558 = vsel %vm547, %v489, %v537
    %v559 = vsel %vm547, %v488, %v538
    %v560 = vsel %vm547, %v487, %v539
    %v561 = vsel %vm547, %v486, %v540
    %v562 = vsel %vm547, %v485, %v541
    %v563 = vsel %vm547, %v500, %v542
    %vm564 = vcmp.ge.s32.totalorder %v390, 56
    %vm565 = vcmp.lt.s32.totalorder %v390, 64
    %vm566 = vmand %vm564, %vm565
    %v567 = vsel %vm566, 1, 0
    %vm568 = vcmp.eq.s32.totalorder %v567, 1
    %v569 = vsel %vm568, %v424, %v548
    %v570 = vsel %vm568, %v423, %v549
    %v571 = vsel %vm568, %v422, %v550
    %v572 = vsel %vm568, %v421, %v551
    %v573 = vsel %vm568, %v420, %v552
    %v574 = vsel %vm568, %v419, %v553
    %v575 = vsel %vm568, %v418, %v554
    %v576 = vsel %vm568, %v417, %v555
    %v577 = vsel %vm568, %v416, %v556
    %v578 = vsel %vm568, %v415, %v557
    %v579 = vsel %vm568, %v414, %v558
    %v580 = vsel %vm568, %v413, %v559
    %v581 = vsel %vm568, %v412, %v560
    %v582 = vsel %vm568, %v411, %v561
    %v583 = vsel %vm568, %v410, %v562
    %v584 = vsel %vm568, %v425, %v563
    %vm585 = vcmp.ge.s32.totalorder %v390, 64
    %vm586 = vcmp.lt.s32.totalorder %v390, 72
    %vm587 = vmand %vm585, %vm586
    %v588 = vsel %vm587, 1, 0
    %vm589 = vcmp.eq.s32.totalorder %v588, 1
    %v590 = vsel %vm589, %v374, %v569
    %v591 = vsel %vm589, %v375, %v570
    %v592 = vsel %vm589, %v376, %v571
    %v593 = vsel %vm589, %v377, %v572
    %v594 = vsel %vm589, %v378, %v573
    %v595 = vsel %vm589, %v379, %v574
    %v596 = vsel %vm589, %v380, %v575
    %v597 = vsel %vm589, %v381, %v576
    %v598 = vsel %vm589, %v382, %v577
    %v599 = vsel %vm589, %v383, %v578
    %v600 = vsel %vm589, %v384, %v579
    %v601 = vsel %vm589, %v385, %v580
    %v602 = vsel %vm589, %v386, %v581
    %v603 = vsel %vm589, %v387, %v582
    %v604 = vsel %vm589, %v388, %v583
    %v605 = vsel %vm589, %v373, %v584
    %vm606 = vcmp.ge.s32.totalorder %v390, 72
    %vm607 = vcmp.lt.s32.totalorder %v390, 80
    %vm608 = vmand %vm606, %vm607
    %v609 = vsel %vm608, 1, 0
    %vm610 = vcmp.eq.s32.totalorder %v609, 1
    %v611 = vsel %vm610, %v498, %v590
    %v612 = vsel %vm610, %v497, %v591
    %v613 = vsel %vm610, %v496, %v592
    %v614 = vsel %vm610, %v495, %v593
    %v615 = vsel %vm610, %v494, %v594
    %v616 = vsel %vm610, %v493, %v595
    %v617 = vsel %vm610, %v492, %v596
    %v618 = vsel %vm610, %v491, %v597
    %v619 = vsel %vm610, %v490, %v598
    %v620 = vsel %vm610, %v489, %v599
    %v621 = vsel %vm610, %v488, %v600
    %v622 = vsel %vm610, %v487, %v601
    %v623 = vsel %vm610, %v486, %v602
    %v624 = vsel %vm610, %v485, %v603
    %v625 = vsel %vm610, %v500, %v604
    %v626 = vsel %vm610, %v499, %v605
    %v627 = vld [vmem:[#allocation2] sm:$0xff]
    %v628 = vld [vmem:[#allocation2 + $0x8] sm:$0xff]
    %v629 = vld [vmem:[#allocation2 + $0x10] sm:$0xff]
    %v630 = vld [vmem:[#allocation2 + $0x18] sm:$0xff]
    %v631 = vld [vmem:[#allocation2 + $0x20] sm:$0xff]
    %v632 = vld [vmem:[#allocation2 + $0x28] sm:$0xff]
    %v633 = vld [vmem:[#allocation2 + $0x30] sm:$0xff]
    %v634 = vld [vmem:[#allocation2 + $0x38] sm:$0xff]
    %v635 = vld [vmem:[#allocation2 + $0x40] sm:$0xff]
    %v636 = vld [vmem:[#allocation2 + $0x48] sm:$0xff]
    %v637 = vld [vmem:[#allocation2 + $0x50] sm:$0xff]
    %v638 = vld [vmem:[#allocation2 + $0x58] sm:$0xff]
    %v639 = vld [vmem:[#allocation2 + $0x60] sm:$0xff]
    %v640 = vld [vmem:[#allocation2 + $0x68] sm:$0xff]
    %v641 = vld [vmem:[#allocation2 + $0x70] sm:$0xff]
    %v642 = vld [vmem:[#allocation2 + $0x78] sm:$0xff]
    %v643 = vmul.f32 %v611, %v627
    %v644 = vmul.f32 %v612, %v628
    %v645 = vmul.f32 %v613, %v629
    %v646 = vmul.f32 %v614, %v630
    %v647 = vmul.f32 %v615, %v631
    %v648 = vmul.f32 %v616, %v632
    %v649 = vmul.f32 %v617, %v633
    %v650 = vmul.f32 %v618, %v634
    %v651 = vmul.f32 %v619, %v635
    %v652 = vmul.f32 %v620, %v636
    %v653 = vmul.f32 %v621, %v637
    %v654 = vmul.f32 %v622, %v638
    %v655 = vmul.f32 %v623, %v639
    %v656 = vmul.f32 %v624, %v640
    %v657 = vmul.f32 %v625, %v641
    %v658 = vmul.f32 %v626, %v642
    %v659 = vld [vmem:[%s4] sm:$0xff]
    %v660 = vld [vmem:[%s4 + $0x8] sm:$0xff]
    %v661 = vld [vmem:[%s4 + $0x10] sm:$0xff]
    %v662 = vld [vmem:[%s4 + $0x18] sm:$0xff]
    %v663 = vld [vmem:[%s4 + $0x20] sm:$0xff]
    %v664 = vld [vmem:[%s4 + $0x28] sm:$0xff]
    %v665 = vld [vmem:[%s4 + $0x30] sm:$0xff]
    %v666 = vld [vmem:[%s4 + $0x38] sm:$0xff]
    %v667 = vld [vmem:[%s4 + $0x40] sm:$0xff]
    %v668 = vld [vmem:[%s4 + $0x48] sm:$0xff]
    %v669 = vld [vmem:[%s4 + $0x50] sm:$0xff]
    %v670 = vld [vmem:[%s4 + $0x58] sm:$0xff]
    %v671 = vld [vmem:[%s4 + $0x60] sm:$0xff]
    %v672 = vld [vmem:[%s4 + $0x68] sm:$0xff]
    %v673 = vld [vmem:[%s4 + $0x70] sm:$0xff]
    %v674 = vld [vmem:[%s4 + $0x78] sm:$0xff]
    %675 = vmatprep.subr.mxu0 0.0
    %676 = vmatpush1.msra.mxu0 %v659
    %677 = vmatprep.subr.mxu0 0.0
    %678 = vmatpush1.msra.mxu0 %v660
    %679 = vmatprep.subr.mxu0 0.0
    %680 = vmatpush1.msra.mxu0 %v661
    %681 = vmatprep.subr.mxu0 0.0
    %682 = vmatpush1.msra.mxu0 %v662
    %683 = vmatprep.subr.mxu0 0.0
    %684 = vmatpush1.msra.mxu0 %v663
    %685 = vmatprep.subr.mxu0 0.0
    %686 = vmatpush1.msra.mxu0 %v664
    %687 = vmatprep.subr.mxu0 0.0
    %688 = vmatpush1.msra.mxu0 %v665
    %689 = vmatprep.subr.mxu0 0.0
    %690 = vmatpush1.msra.mxu0 %v666
    %691 = vmatprep.subr.mxu0 0.0
    %692 = vmatpush1.msra.mxu0 %v667
    %693 = vmatprep.subr.mxu0 0.0
    %694 = vmatpush1.msra.mxu0 %v668
    %695 = vmatprep.subr.mxu0 0.0
    %696 = vmatpush1.msra.mxu0 %v669
    %697 = vmatprep.subr.mxu0 0.0
    %698 = vmatpush1.msra.mxu0 %v670
    %699 = vmatprep.subr.mxu0 0.0
    %700 = vmatpush1.msra.mxu0 %v671
    %701 = vmatprep.subr.mxu0 0.0
    %702 = vmatpush1.msra.mxu0 %v672
    %703 = vmatprep.subr.mxu0 0.0
    %704 = vmatpush1.msra.mxu0 %v673
    %705 = vmatprep.subr.mxu0 0.0
    %706 = vmatpush1.msra.mxu0 %v674
    %707 = vmatprep.subr.mxu0 0.0
    %708 = vmatpush1.msra.mxu0 0.0
    %709 = vmatprep.subr.mxu0 0.0
    %710 = vmatpush1.msra.mxu0 0.0
    %711 = vmatprep.subr.mxu0 0.0
    %712 = vmatpush1.msra.mxu0 0.0
    %713 = vmatprep.subr.mxu0 0.0
    %714 = vmatpush1.msra.mxu0 0.0
    %715 = vmatprep.subr.mxu0 0.0
    %716 = vmatpush1.msra.mxu0 0.0
    %717 = vmatprep.subr.mxu0 0.0
    %718 = vmatpush1.msra.mxu0 0.0
    %719 = vmatprep.subr.mxu0 0.0
    %720 = vmatpush1.msra.mxu0 0.0
    %721 = vmatprep.subr.mxu0 0.0
    %722 = vmatpush1.msra.mxu0 0.0
    %723 = vmatprep.subr.mxu0 0.0
    %724 = vmatpush1.msra.mxu0 0.0
    %725 = vmatprep.subr.mxu0 0.0
    %726 = vmatpush1.msra.mxu0 0.0
    %727 = vmatprep.subr.mxu0 0.0
    %728 = vmatpush1.msra.mxu0 0.0
    %729 = vmatprep.subr.mxu0 0.0
    %730 = vmatpush1.msra.mxu0 0.0
    %731 = vmatprep.subr.mxu0 0.0
    %732 = vmatpush1.msra.mxu0 0.0
    %733 = vmatprep.subr.mxu0 0.0
    %734 = vmatpush1.msra.mxu0 0.0
    %735 = vmatprep.subr.mxu0 0.0
    %736 = vmatpush1.msra.mxu0 0.0
    %737 = vmatprep.subr.mxu0 0.0
    %738 = vmatpush1.msra.mxu0 0.0
    %739 = vmatprep.mubr.f32.mxu0 0.0
    %740 = vmatmul.mubr.f32.gmra.mrb[0].mxu0 %v643
    %v741 = vpop.f32.mrb[0].mxu0
    %v742 = vadd.f32 0.0, %v741
    %v743 = vpop.f32.mrb[0].mxu0
    %744 = vmatprep.mubr.f32.mxu0 0.0
    %745 = vmatmul.mubr.f32.gmra.mrb[0].mxu0 %v644
    %v746 = vpop.f32.mrb[0].mxu0
    %v747 = vadd.f32 0.0, %v746
    %v748 = vpop.f32.mrb[0].mxu0
    %749 = vmatprep.mubr.f32.mxu0 0.0
    %750 = vmatmul.mubr.f32.gmra.mrb[0].mxu0 %v645
    %v751 = vpop.f32.mrb[0].mxu0
    %v752 = vadd.f32 0.0, %v751
    %v753 = vpop.f32.mrb[0].mxu0
    %754 = vmatprep.mubr.f32.mxu0 0.0
    %755 = vmatmul.mubr.f32.gmra.mrb[0].mxu0 %v646
    %v756 = vpop.f32.mrb[0].mxu0
    %v757 = vadd.f32 0.0, %v756
    %v758 = vpop.f32.mrb[0].mxu0
    %759 = vmatprep.mubr.f32.mxu0 0.0
    %760 = vmatmul.mubr.f32.gmra.mrb[0].mxu0 %v647
    %v761 = vpop.f32.mrb[0].mxu0
    %v762 = vadd.f32 0.0, %v761
    %v763 = vpop.f32.mrb[0].mxu0
    %764 = vmatprep.mubr.f32.mxu0 0.0
    %765 = vmatmul.mubr.f32.gmra.mrb[0].mxu0 %v648
    %v766 = vpop.f32.mrb[0].mxu0
    %v767 = vadd.f32 0.0, %v766
    %v768 = vpop.f32.mrb[0].mxu0
    %769 = vmatprep.mubr.f32.mxu0 0.0
    %770 = vmatmul.mubr.f32.gmra.mrb[0].mxu0 %v649
    %v771 = vpop.f32.mrb[0].mxu0
    %v772 = vadd.f32 0.0, %v771
    %v773 = vpop.f32.mrb[0].mxu0
    %774 = vmatprep.mubr.f32.mxu0 0.0
    %775 = vmatmul.mubr.f32.gmra.mrb[0].mxu0 %v650
    %v776 = vpop.f32.mrb[0].mxu0
    %v777 = vadd.f32 0.0, %v776
    %v778 = vpop.f32.mrb[0].mxu0
    %779 = vmatprep.mubr.f32.mxu0 0.0
    %780 = vmatmul.mubr.f32.gmra.mrb[0].mxu0 %v651
    %v781 = vpop.f32.mrb[0].mxu0
    %v782 = vadd.f32 0.0, %v781
    %v783 = vpop.f32.mrb[0].mxu0
    %784 = vmatprep.mubr.f32.mxu0 0.0
    %785 = vmatmul.mubr.f32.gmra.mrb[0].mxu0 %v652
    %v786 = vpop.f32.mrb[0].mxu0
    %v787 = vadd.f32 0.0, %v786
    %v788 = vpop.f32.mrb[0].mxu0
    %789 = vmatprep.mubr.f32.mxu0 0.0
    %790 = vmatmul.mubr.f32.gmra.mrb[0].mxu0 %v653
    %v791 = vpop.f32.mrb[0].mxu0
    %v792 = vadd.f32 0.0, %v791
    %v793 = vpop.f32.mrb[0].mxu0
    %794 = vmatprep.mubr.f32.mxu0 0.0
    %795 = vmatmul.mubr.f32.gmra.mrb[0].mxu0 %v654
    %v796 = vpop.f32.mrb[0].mxu0
    %v797 = vadd.f32 0.0, %v796
    %v798 = vpop.f32.mrb[0].mxu0
    %799 = vmatprep.mubr.f32.mxu0 0.0
    %800 = vmatmul.mubr.f32.gmra.mrb[0].mxu0 %v655
    %v801 = vpop.f32.mrb[0].mxu0
    %v802 = vadd.f32 0.0, %v801
    %v803 = vpop.f32.mrb[0].mxu0
    %804 = vmatprep.mubr.f32.mxu0 0.0
    %805 = vmatmul.mubr.f32.gmra.mrb[0].mxu0 %v656
    %v806 = vpop.f32.mrb[0].mxu0
    %v807 = vadd.f32 0.0, %v806
    %v808 = vpop.f32.mrb[0].mxu0
    %809 = vmatprep.mubr.f32.mxu0 0.0
    %810 = vmatmul.mubr.f32.gmra.mrb[0].mxu0 %v657
    %v811 = vpop.f32.mrb[0].mxu0
    %v812 = vadd.f32 0.0, %v811
    %v813 = vpop.f32.mrb[0].mxu0
    %814 = vmatprep.mubr.f32.mxu0 0.0
    %815 = vmatmul.mubr.f32.gmra.mrb[0].mxu0 %v658
    %v816 = vpop.f32.mrb[0].mxu0
    %v817 = vadd.f32 0.0, %v816
    %v818 = vpop.f32.mrb[0].mxu0
    %819 = vdwg.mxu0
    %v820 = vld [vmem:[%s5] sm:$0x1]
    %v821 = vld [vmem:[%s6] sm:$0x1]
    %v822 = vadd.f32 %v742, %v747
    %v823 = vadd.f32 %v822, %v752
    %v824 = vadd.f32 %v823, %v757
    %v825 = vadd.f32 %v824, %v762
    %v826 = vadd.f32 %v825, %v767
    %v827 = vadd.f32 %v826, %v772
    %v828 = vadd.f32 %v827, %v777
    %v829 = vadd.f32 %v828, %v782
    %v830 = vadd.f32 %v829, %v787
    %v831 = vadd.f32 %v830, %v792
    %v832 = vadd.f32 %v831, %v797
    %v833 = vadd.f32 %v832, %v802
    %v834 = vadd.f32 %v833, %v807
    %v835 = vadd.f32 %v834, %v812
    %v836 = vadd.f32 %v835, %v817
    %v837 = vrot.slane %v836, 4
    %v838 = vadd.f32 %v836, %v837
    %v839 = vrot.slane %v838, 2
    %v840 = vadd.f32 %v838, %v839
    %v841 = vrot.slane %v840, 1
    %v842 = vadd.f32 %v840, %v841
    %v843 = vmul.f32 %v842, 0.0078125
    %v844 = vmul.f32 %v742, %v742
    %v845 = vmul.f32 %v747, %v747
    %v846 = vmul.f32 %v752, %v752
    %v847 = vmul.f32 %v757, %v757
    %v848 = vmul.f32 %v762, %v762
    %v849 = vmul.f32 %v767, %v767
    %v850 = vmul.f32 %v772, %v772
    %v851 = vmul.f32 %v777, %v777
    %v852 = vmul.f32 %v782, %v782
    %v853 = vmul.f32 %v787, %v787
    %v854 = vmul.f32 %v792, %v792
    %v855 = vmul.f32 %v797, %v797
    %v856 = vmul.f32 %v802, %v802
    %v857 = vmul.f32 %v807, %v807
    %v858 = vmul.f32 %v812, %v812
    %v859 = vmul.f32 %v817, %v817
    %v860 = vadd.f32 %v844, %v845
    %v861 = vadd.f32 %v860, %v846
    %v862 = vadd.f32 %v861, %v847
    %v863 = vadd.f32 %v862, %v848
    %v864 = vadd.f32 %v863, %v849
    %v865 = vadd.f32 %v864, %v850
    %v866 = vadd.f32 %v865, %v851
    %v867 = vadd.f32 %v866, %v852
    %v868 = vadd.f32 %v867, %v853
    %v869 = vadd.f32 %v868, %v854
    %v870 = vadd.f32 %v869, %v855
    %v871 = vadd.f32 %v870, %v856
    %v872 = vadd.f32 %v871, %v857
    %v873 = vadd.f32 %v872, %v858
    %v874 = vadd.f32 %v873, %v859
    %v875 = vrot.slane %v874, 4
    %v876 = vadd.f32 %v874, %v875
    %v877 = vrot.slane %v876, 2
    %v878 = vadd.f32 %v876, %v877
    %v879 = vrot.slane %v878, 1
    %v880 = vadd.f32 %v878, %v879
    %v881 = vmul.f32 %v880, 0.0078125
    %v882 = vmul.f32 %v843, %v843
    %v883 = vsub.f32 %v881, %v882
    %v884 = vmax.f32 %v883, 0.0
    %v885 = vadd.f32 %v884, 1e-05
    %v886 = vrsqrt.pop %v885
    %v887 = vmul.f32 %v820, %v886
    %v888 = vmul.f32 %v843, %v887
    %v889 = vsub.f32 %v821, %v888
    %v891 = vlaneseq
    %v892 = vshrl.u32 %v891, 7
    %v893 = vsub.s32 0, %v892
    %v894 = vrot.slane %v887, %v893
    %v896 = vmul.f32 %v742, %v894
    %v897 = vmul.f32 %v747, %v894
    %v898 = vmul.f32 %v752, %v894
    %v899 = vmul.f32 %v757, %v894
    %v900 = vmul.f32 %v762, %v894
    %v901 = vmul.f32 %v767, %v894
    %v902 = vmul.f32 %v772, %v894
    %v903 = vmul.f32 %v777, %v894
    %v904 = vmul.f32 %v782, %v894
    %v905 = vmul.f32 %v787, %v894
    %v906 = vmul.f32 %v792, %v894
    %v907 = vmul.f32 %v797, %v894
    %v908 = vmul.f32 %v802, %v894
    %v909 = vmul.f32 %v807, %v894
    %v910 = vmul.f32 %v812, %v894
    %v911 = vmul.f32 %v817, %v894
    %v913 = vlaneseq
    %v914 = vshrl.u32 %v913, 7
    %v915 = vsub.s32 0, %v914
    %v916 = vrot.slane %v889, %v915
    %v918 = vadd.f32 %v896, %v916
    %v919 = vadd.f32 %v897, %v916
    %v920 = vadd.f32 %v898, %v916
    %v921 = vadd.f32 %v899, %v916
    %v922 = vadd.f32 %v900, %v916
    %v923 = vadd.f32 %v901, %v916
    %v924 = vadd.f32 %v902, %v916
    %v925 = vadd.f32 %v903, %v916
    %v926 = vadd.f32 %v904, %v916
    %v927 = vadd.f32 %v905, %v916
    %v928 = vadd.f32 %v906, %v916
    %v929 = vadd.f32 %v907, %v916
    %v930 = vadd.f32 %v908, %v916
    %v931 = vadd.f32 %v909, %v916
    %v932 = vadd.f32 %v910, %v916
    %v933 = vadd.f32 %v911, %v916
    %vm934 = vcmp.lt.s32.totalorder %v390, 8
    %v935 = vsel %vm934, 1, 0
    %vm936 = vcmp.eq.s32.totalorder %v935, 1
    %v937 = vsel %vm936, %v357, 0.0
    %v938 = vsel %vm936, %v358, 0.0
    %v939 = vsel %vm936, %v359, 0.0
    %v940 = vsel %vm936, %v360, 0.0
    %v941 = vsel %vm936, %v361, 0.0
    %v942 = vsel %vm936, %v362, 0.0
    %v943 = vsel %vm936, %v363, 0.0
    %v944 = vsel %vm936, %v364, 0.0
    %v945 = vsel %vm936, %v365, 0.0
    %v946 = vsel %vm936, %v366, 0.0
    %v947 = vsel %vm936, %v367, 0.0
    %v948 = vsel %vm936, %v368, 0.0
    %v949 = vsel %vm936, %v369, 0.0
    %v950 = vsel %vm936, %v370, 0.0
    %v951 = vsel %vm936, %v371, 0.0
    %v952 = vsel %vm936, %v372, 0.0
    %v953 = vadd.f32 %v918, %v937
    %v954 = vadd.f32 %v919, %v938
    %v955 = vadd.f32 %v920, %v939
    %v956 = vadd.f32 %v921, %v940
    %v957 = vadd.f32 %v922, %v941
    %v958 = vadd.f32 %v923, %v942
    %v959 = vadd.f32 %v924, %v943
    %v960 = vadd.f32 %v925, %v944
    %v961 = vadd.f32 %v926, %v945
    %v962 = vadd.f32 %v927, %v946
    %v963 = vadd.f32 %v928, %v947
    %v964 = vadd.f32 %v929, %v948
    %v965 = vadd.f32 %v930, %v949
    %v966 = vadd.f32 %v931, %v950
    %v967 = vadd.f32 %v932, %v951
    %v968 = vadd.f32 %v933, %v952
    %v969 = vmax.f32 %v953, 0.0
    %v970 = vmax.f32 %v954, 0.0
    %v971 = vmax.f32 %v955, 0.0
    %v972 = vmax.f32 %v956, 0.0
    %v973 = vmax.f32 %v957, 0.0
    %v974 = vmax.f32 %v958, 0.0
    %v975 = vmax.f32 %v959, 0.0
    %v976 = vmax.f32 %v960, 0.0
    %v977 = vmax.f32 %v961, 0.0
    %v978 = vmax.f32 %v962, 0.0
    %v979 = vmax.f32 %v963, 0.0
    %v980 = vmax.f32 %v964, 0.0
    %v981 = vmax.f32 %v965, 0.0
    %v982 = vmax.f32 %v966, 0.0
    %v983 = vmax.f32 %v967, 0.0
    %v984 = vmax.f32 %v968, 0.0
    %985 = vst [vmem:[#allocation5] sm:$0xff] %v969
    %986 = vst [vmem:[#allocation5 + $0x8] sm:$0xff] %v970
    %987 = vst [vmem:[#allocation5 + $0x10] sm:$0xff] %v971
    %988 = vst [vmem:[#allocation5 + $0x18] sm:$0xff] %v972
    %989 = vst [vmem:[#allocation5 + $0x20] sm:$0xff] %v973
    %990 = vst [vmem:[#allocation5 + $0x28] sm:$0xff] %v974
    %991 = vst [vmem:[#allocation5 + $0x30] sm:$0xff] %v975
    %992 = vst [vmem:[#allocation5 + $0x38] sm:$0xff] %v976
    %993 = vst [vmem:[#allocation5 + $0x40] sm:$0xff] %v977
    %994 = vst [vmem:[#allocation5 + $0x48] sm:$0xff] %v978
    %995 = vst [vmem:[#allocation5 + $0x50] sm:$0xff] %v979
    %996 = vst [vmem:[#allocation5 + $0x58] sm:$0xff] %v980
    %997 = vst [vmem:[#allocation5 + $0x60] sm:$0xff] %v981
    %998 = vst [vmem:[#allocation5 + $0x68] sm:$0xff] %v982
    %999 = vst [vmem:[#allocation5 + $0x70] sm:$0xff] %v983
    %1000 = vst [vmem:[#allocation5 + $0x78] sm:$0xff] %v984
    // Predicated region
    $region38: #{tpu_custom_call.1} parent=1 // pred_check
      _
    $region39: #{tpu_custom_call.1} parent=1 // pred_check_branch
      %1002 = sbr.rel (0) target = $region41
    $region40: #{tpu_custom_call.1} parent=1 // pred_region
      %s1004 = ssub.s32 2048, 2048
      %1005 = vsyncadd [#allocation4], %s1004
      %s1006 = sshll.u32 [#allocation5], 4
      %s1007 = int_to_ptr.vmem [resolvable:$true] %s1006
      %1012 = dma.vmem_to_hbm [thread:$0]  %s1007, 2048, %s8, [#allocation4], 128, 128, 8
    $region41: #{tpu_custom_call.1} parent=1 // pred_fallthru
      _
    // Predicated region
    $region42: #{tpu_custom_call.1} parent=1 // pred_check
      _
    $region43: #{tpu_custom_call.1} parent=1 // pred_check_branch
      %1014 = sbr.rel (0) target = $region45
    $region44: #{tpu_custom_call.1} parent=1 // pred_region
      %1015 = dma.done [#allocation4], 2048
    $region45: #{tpu_custom_call.1} parent=1 // pred_fallthru
      _
    %1016 = vsyncpa [#allocation3], 1
    %1017 = vsyncpa [#allocation4], 1

</llo_original>
